<compile_context>
chip_gen: v6e
topology: v6e:2x2x1
jax: 0.10.0
libtpu: 0.0.40
codegen_flags: <defaults>
</compile_context>

<pallas_src>
import functools

import jax
import jax.numpy as jnp
from jax import lax
from jax.experimental import pallas as pl
from jax.experimental.pallas import tpu as pltpu

LANES = 128
SUBLANES = 8
BOX_LANES = 4                          # l, t, r, b interleaved along lanes
BOXES_PER_ROW = LANES // BOX_LANES     # 32 boxes per 128-lane row
CHUNK_ROWS = 256                       # rows processed per in-kernel iteration


def _round_up(x, m):
    return ((x + m - 1) // m) * m


@functools.lru_cache(maxsize=None)
def _lane_shift(delta):
    """Static `shift` so pltpu.roll(x, shift, axis=1)[..., j] == x[..., j + delta].

    pltpu.roll is expected to follow jnp.roll semantics; this tiny one-time
    probe pins the lane-rotation direction so the stride-2 pairing below is an
    exact permutation on any jax / libtpu combination.
    """
    def probe(x_ref, o_ref):
        o_ref[...] = pltpu.roll(x_ref[...], 1, axis=1)

    x = jnp.broadcast_to(jnp.arange(LANES, dtype=jnp.float32), (SUBLANES, LANES))
    y = pl.pallas_call(
        probe, out_shape=jax.ShapeDtypeStruct((SUBLANES, LANES), jnp.float32))(x)
    first = int(jax.device_get(y[0, 0]))
    if first == LANES - 1:   # jnp.roll convention: y[j] = x[j - shift]
        return (-delta) % LANES
    if first == 1:           # opposite convention: y[j] = x[j + shift]
        return delta % LANES
    raise ValueError(f"unexpected pltpu.roll semantics (probe saw {first})")


def _make_kernel(tile_rows, chunk_rows, valid_rows, need_row_mask, sh2, sh1):
    """Kernel over (tile_rows, 128) lane-interleaved blocks of pred / gt."""
    n_groups = chunk_rows // SUBLANES

    def kernel(pred_ref, gt_ref, res_ref):
        i = pl.program_id(0)
        # Rows of this block holding real data (the last block may be partial).
        rem = jnp.clip(valid_rows - i * tile_rows, 0, tile_rows)
        n_chunks = (rem + chunk_rows - 1) // chunk_rows

        # Lane holding each box's `l` coordinate (also the g_l > 0 filter lane).
        lane_ids = lax.broadcasted_iota(jnp.int32, (chunk_rows, LANES), 1)
        lane_sel = (lane_ids % BOX_LANES) == 0
        if need_row_mask:
            local_rows = lax.broadcasted_iota(jnp.int32, (chunk_rows, LANES), 0)

        # Exact lane permutations (XLU slot), no arithmetic error.
        def pair_sum(x):    # lane 4k: x_l + x_r ; lane 4k+1: x_t + x_b
            return x + pltpu.roll(x, sh2, axis=1)

        def pair_prod(x):   # lane 4k: x[4k] * x[4k+1]
            return x * pltpu.roll(x, sh1, axis=1)

        def body(c, carry):
            loss_acc, cnt_acc = carry
            off = pl.multiple_of(c * chunk_rows, chunk_rows)
            o = pred_ref[pl.ds(off, chunk_rows), :]
            g = gt_ref[pl.ds(off, chunk_rows), :]

            so, sg = pair_sum(o), pair_sum(g)
            sm = pair_sum(jnp.minimum(o, g))
            sx = pair_sum(jnp.maximum(o, g))

            o_area, g_area = pair_prod(so), pair_prod(sg)
            inter, c_area = pair_prod(sm), pair_prod(sx)

            union = o_area + g_area - inter
            # Exact divides keep per-box parity with the PyTorch math; see the
            # header note about the (rejected-for-now) EUP approx reciprocal.
            iou = inter / (union + 1e-9)
            giou = iou - (c_area - union) / (c_area + 1e-9)
            loss = 1.0 - giou

            mask = lane_sel & (g > 0.0)
            if need_row_mask:
                mask = mask & ((local_rows + off) < rem)

            # Select (NOT multiply): masked-out lanes may hold inf/NaN.
            m_loss = jnp.where(mask, loss, 0.0)
            m_cnt = jnp.where(mask, 1.0, 0.0)

            # Collapse (chunk, 128) -> (8, 128) with pure vreg-wise VPU adds.
            loss_acc = loss_acc + jnp.sum(
                m_loss.reshape(n_groups, SUBLANES, LANES), axis=0)
            cnt_acc = cnt_acc + jnp.sum(
                m_cnt.reshape(n_groups, SUBLANES, LANES), axis=0)
            return loss_acc, cnt_acc

        zeros = jnp.zeros((SUBLANES, LANES), jnp.float32)
        loss8, cnt8 = lax.fori_loop(0, n_chunks, body, (zeros, zeros))

        # Merged lane-dense partial: sublanes 0-7 = loss sum, 8-15 = count.
        res_ref[0, :SUBLANES, :] = loss8
        res_ref[0, SUBLANES:, :] = cnt8

    return kernel


@functools.partial(jax.jit, static_argnums=(2, 3, 4))
def _giou_loss_impl(pred, gt, tile_rows, sh2, sh1):
    n = pred.shape[0]
    # One 128-lane row holds 32 boxes with [l, t, r, b] interleaved along lanes,
    # so (N, 4) -> (rows, 128) is a pure (free) reshape of the row-major buffer:
    # the kernel streams the boxes straight from HBM with no transpose pass.
    n_boxes = max(_round_up(n, BOXES_PER_ROW), SUBLANES * BOXES_PER_ROW)
    rows = n_boxes // BOXES_PER_ROW

    tile_rows = max(CHUNK_ROWS, _round_up(tile_rows, CHUNK_ROWS))
    if rows >= 2 * CHUNK_ROWS:
        # >= 2 grid steps so the "parallel" axis can shard across v7x's two
        # TensorCores; each step stays a multiple of the inner chunk size.
        tr = min(tile_rows, _round_up(pl.cdiv(rows, 2), CHUNK_ROWS))
    else:
        tr = _round_up(min(rows, CHUNK_ROWS), SUBLANES)
    chunk = min(CHUNK_ROWS, tr)          # tr is always a multiple of chunk
    num_tiles = pl.cdiv(rows, tr)
    need_row_mask = (rows % chunk) != 0  # partial last chunk holds garbage rows

    def to_rows(x):
        flat = x.reshape(-1)
        pad = n_boxes * BOX_LANES - flat.shape[0]
        if pad:
            # TODO(synk): only hit when N % 32 != 0 (or N < 256); an upstream
            # 32-aligned N (or allow_input_fusion on the pad producer) removes
            # this one remaining extra copy as well.
            flat = jnp.pad(flat, (0, pad))   # zero pad => g_l == 0 => filtered
        return flat.reshape(rows, LANES)

    parts = pl.pallas_call(
        _make_kernel(tr, chunk, rows, need_row_mask, sh2, sh1),
        out_shape=jax.ShapeDtypeStruct((num_tiles, 2 * SUBLANES, LANES),
                                       jnp.float32),
        grid=(num_tiles,),
        in_specs=[
            pl.BlockSpec((tr, LANES), lambda i: (i, 0)),
            pl.BlockSpec((tr, LANES), lambda i: (i, 0)),
        ],
        out_specs=pl.BlockSpec((1, 2 * SUBLANES, LANES), lambda i: (i, 0, 0)),
        compiler_params=pltpu.CompilerParams(
            dimension_semantics=("parallel",),
            vmem_limit_bytes=32 * 1024 * 1024),
    )(to_rows(pred), to_rows(gt))

    # Tiny epilogue: one reduction, then split into loss-sum / count.
    # count == 0 -> NaN, matching torch's mean over an empty selection.
    sums = jnp.sum(parts, axis=(0, 2))           # (16,)
    return jnp.sum(sums[:SUBLANES]) / jnp.sum(sums[SUBLANES:])


def giou_loss(out, gt, tile_rows=8192):
    """out, gt: (N, 4) arrays of [l, t, r, b]; returns the scalar mean GIoU loss."""
    out = jnp.asarray(out, jnp.float32)
    gt = jnp.asarray(gt, jnp.float32)
    if out.shape[0] == 0:
        # torch: loss[filt].mean() over an empty selection -> NaN
        return jnp.array(jnp.nan, dtype=jnp.float32)
    return _giou_loss_impl(out, gt, int(tile_rows), _lane_shift(2), _lane_shift(1))


def _giou_loss_ref(out, gt):
    """Pure-JAX reference replicating the PyTorch module semantics."""
    out = jnp.asarray(out, jnp.float32)
    gt = jnp.asarray(gt, jnp.float32)
    o_l, o_t, o_r, o_b = out[:, 0], out[:, 1], out[:, 2], out[:, 3]
    g_l, g_t, g_r, g_b = gt[:, 0], gt[:, 1], gt[:, 2], gt[:, 3]
    mask = g_l > 0
    o_a = (o_t + o_b) * (o_l + o_r)
    g_a = (g_t + g_b) * (g_l + g_r)
    iw = jnp.minimum(o_l, g_l) + jnp.minimum(o_r, g_r)
    ih = jnp.minimum(o_t, g_t) + jnp.minimum(o_b, g_b)
    inter = iw * ih
    union = o_a + g_a - inter
    iou = inter / (union + 1e-9)
    cw = jnp.maximum(o_l, g_l) + jnp.maximum(o_r, g_r)
    ch = jnp.maximum(o_t, g_t) + jnp.maximum(o_b, g_b)
    c_area = cw * ch
    giou = iou - (c_area - union) / (c_area + 1e-9)
    loss = jnp.where(mask, 1.0 - giou, 0.0)
    return jnp.sum(loss) / jnp.sum(mask.astype(jnp.float32))


if __name__ == "__main__":
    key = jax.random.PRNGKey(0)

    # Case 1: N % 32 != 0 -> zero-pad + partial-chunk row masking, 1 grid step.
    # Case 2: 32-aligned N -> fully copy-free path, no row masking.
    # Case 3: larger N -> >=2 "parallel" grid steps, multi-chunk inner loop,
    #         partial last block.
    cases = [(2000, 8192), (4096, 8192), (24576, 4096)]
    for n, tr in cases:
        k1, k2, key = jax.random.split(key, 3)
        # predicted l/t/r/b distances (all positive)
        pred = jax.random.uniform(k1, (n, 4), jnp.float32, minval=0.1, maxval=2.0)
        # ground-truth distances; some g_l <= 0 so the filter is exercised
        gt = jax.random.uniform(k2, (n, 4), jnp.float32, minval=-0.5, maxval=2.0)

        loss = giou_loss(pred, gt, tile_rows=tr)
        jax.block_until_ready(loss)

        ref = _giou_loss_ref(pred, gt)
        assert jnp.allclose(loss, ref, rtol=1e-5, atol=1e-5), (n, tr, loss, ref)

    # Empty input -> NaN (torch mean over an empty boolean selection).
    empty = jnp.zeros((0, 4), jnp.float32)
    assert bool(jnp.isnan(giou_loss(empty, empty)))

    print("KERNEL_OK")
</pallas_src>

<mosaic_0001>
module attributes {stable_mosaic.version = 11 : i64} {
  func.func @probe(%arg0: memref<8x128xf32, #tpu.memory_space<vmem>>, %arg1: memref<8x128xf32, #tpu.memory_space<vmem>>) attributes {dimension_semantics = [], scalar_prefetch = 0 : i64, scratch_operands = 0 : i64, tpu.core_type = #tpu.core_type<tc>} {
    %c0 = arith.constant 0 : index
    %c0_0 = arith.constant 0 : index
    %0 = vector.load %arg0[%c0, %c0_0] : memref<8x128xf32, #tpu.memory_space<vmem>>, vector<8x128xf32>
    %c1_i32 = arith.constant 1 : i32
    %1 = tpu.dynamic_rotate %0 by %c1_i32 dim 1 : vector<8x128xf32>, i32 -> vector<8x128xf32>
    %c0_1 = arith.constant 0 : index
    %c0_2 = arith.constant 0 : index
    %2 = vector.load %arg1[%c0_1, %c0_2] : memref<8x128xf32, #tpu.memory_space<vmem>>, vector<8x128xf32>
    tpu.vector_store %arg1[%c0_1, %c0_2], %1 {strides = array<i32>} : memref<8x128xf32, #tpu.memory_space<vmem>>, vector<8x128xf32>,
    return
  }
}

</mosaic_0001>

<llo_original>
// kernel: tpu_custom_call.1
$region0: #{tpu_custom_call.1}
  #allocation0 [shape = 'u32[]', space=smem, size = 0x4, offset = 0x4, fixed_abs, tag = 'smem constant byte address 0x4 - core index']
  #allocation1 [shape = 'u32[144,128]{1,0:T(1,128)}', space=vmem, size = 0x12000, scoped, tag = 'internal scratch']
  %s0 = inlined_call_operand.hbm [shape: f32[8,128], index: 0, kind: input, shape index: {}]
  %s1 = inlined_call_operand.hbm [shape: f32[8,128], index: 1, kind: output, shape index: {}]
  %s2 = sld [smem:[#allocation0]]
  $region18: #{tpu_custom_call.1} parent=0
    _
  %s4 = ssub.s32 1, %s2
  %s5 = scalar_select 0, %s4, %s2
  $region1: #{tpu_custom_call.1} parent=0
    #allocation2 [shape = 'u8[4096]{0}', space=vmem, size = 0x1000, scoped, tag = 'input window, operand 0, single buffered']
    #allocation3 [shape = 's32[1]{0}', space=sflag, size = 0x4, scoped, tag = 'scoped memory for tpu_custom_call.1']
    #allocation4 [shape = 's32[1]{0}', space=sflag, size = 0x4, scoped, tag = 'scoped memory for tpu_custom_call.1']
    #allocation5 [shape = 'u8[4096]{0}', space=vmem, size = 0x1000, scoped, tag = 'output window, operand 0, single buffered']
    %6 = vsyncpa [#allocation3], 0
    %7 = vsyncpa [#allocation4], 0
    // Predicated region
    $region2: #{tpu_custom_call.1} parent=1 // pred_check
      _
    $region3: #{tpu_custom_call.1} parent=1 // pred_check_branch
      %9 = sbr.rel (0) target = $region5
    $region4: #{tpu_custom_call.1} parent=1 // pred_region
      %s11 = ssub.s32 128, 128
      %12 = vsyncadd [#allocation3], %s11
      %s14 = sshll.u32 [#allocation2], 4
      %s15 = int_to_ptr.vmem [resolvable:$true] %s14
      %17 = dma.hbm_to_vmem [thread:$0]  %s0, 128, %s15, [#allocation3]
    $region5: #{tpu_custom_call.1} parent=1 // pred_fallthru
      _
    // Predicated region
    $region6: #{tpu_custom_call.1} parent=1 // pred_check
      _
    $region7: #{tpu_custom_call.1} parent=1 // pred_check_branch
      %19 = sbr.rel (0) target = $region9
    $region8: #{tpu_custom_call.1} parent=1 // pred_region
      %20 = dma.done [#allocation3], 128
    $region9: #{tpu_custom_call.1} parent=1 // pred_fallthru
      _
    %v21 = vld [vmem:[#allocation2] sm:$0xff]
    %22 = vrot.lane.b32.xlu0 %v21, 1
    %v23 = vpop.permute.xlu0 %22
    %24 = vst [vmem:[#allocation5] sm:$0xff] %v23
    // Predicated region
    $region10: #{tpu_custom_call.1} parent=1 // pred_check
      _
    $region11: #{tpu_custom_call.1} parent=1 // pred_check_branch
      %26 = sbr.rel (0) target = $region13
    $region12: #{tpu_custom_call.1} parent=1 // pred_region
      %s28 = ssub.s32 128, 128
      %29 = vsyncadd [#allocation4], %s28
      %s31 = sshll.u32 [#allocation5], 4
      %s32 = int_to_ptr.vmem [resolvable:$true] %s31
      %34 = dma.vmem_to_hbm [thread:$0]  %s32, 128, %s1, [#allocation4]
    $region13: #{tpu_custom_call.1} parent=1 // pred_fallthru
      _
    // Predicated region
    $region14: #{tpu_custom_call.1} parent=1 // pred_check
      _
    $region15: #{tpu_custom_call.1} parent=1 // pred_check_branch
      %36 = sbr.rel (0) target = $region17
    $region16: #{tpu_custom_call.1} parent=1 // pred_region
      %37 = dma.done [#allocation4], 128
    $region17: #{tpu_custom_call.1} parent=1 // pred_fallthru
      _
    %38 = vsyncpa [#allocation3], 1
    %39 = vsyncpa [#allocation4], 1

</llo_original>
